<compile_context>
chip_gen: v6e
topology: v6e:2x2x1
jax: 0.10.0
libtpu: 0.0.40
codegen_flags: <defaults>
</compile_context>

<pallas_src>
import functools

import jax
import jax.numpy as jnp
from jax.experimental import pallas as pl
from jax.experimental.pallas import tpu as pltpu

LANES = 128
MAX_BLOCK_ROWS = 2048  # 2048 x 128 x 4B = 1 MiB per input per block


def _rmsle_kernel(meta_ref, pred_ref, act_ref, out_ref, acc_ref, *, needs_mask):
    i = pl.program_id(0)

    @pl.when(i == 0)
    def _():
        acc_ref[...] = jnp.zeros_like(acc_ref)

    block_rows = pred_ref.shape[0]

    p = pred_ref[...].astype(jnp.float32)
    a = act_ref[...].astype(jnp.float32)
    d = jnp.log1p(p) - jnp.log1p(a)
    dsq = d * d

    if needs_mask:
        # Only compiled in when the last grid block is ragged. Pallas pads
        # out-of-bounds rows with unspecified data; any NaN/Inf it produces in
        # log1p is discarded by the select below (select does not propagate the
        # unselected branch).
        total_rows = meta_ref[1]
        row_idx = i * block_rows + jax.lax.broadcasted_iota(
            jnp.int32, (block_rows, LANES), 0
        )
        dsq = jnp.where(row_idx < total_rows, dsq, 0.0)

    # Pure-VPU fold of the block into the (8, 128) lane-resident accumulator.
    acc_ref[...] += dsq.reshape(block_rows // 8, 8, LANES).sum(axis=0)

    @pl.when(i == pl.num_programs(0) - 1)
    def _():
        n = meta_ref[0].astype(jnp.float32)
        total = jnp.sum(acc_ref[...])  # single XLU cross-lane reduce at the end
        out_ref[...] = jnp.full((1, 1), jnp.sqrt(total / n), dtype=jnp.float32)


def rmsle_loss(pred, actual):
    assert pred.shape == actual.shape
    n_elems = pred.size
    # TODO(synk): guard n_elems == 0 (divide-by-zero) if that call pattern matters.

    flat_pred = pred.reshape(-1)
    flat_act = actual.reshape(-1)

    # Pad only to a lane multiple (<= 127 elems); zeros contribute exactly 0.
    rows = pl.cdiv(n_elems, LANES)
    padded_len = rows * LANES
    if padded_len != n_elems:
        pad = padded_len - n_elems
        flat_pred = jnp.concatenate([flat_pred, jnp.zeros((pad,), flat_pred.dtype)])
        flat_act = jnp.concatenate([flat_act, jnp.zeros((pad,), flat_act.dtype)])

    p2d = flat_pred.reshape(rows, LANES)
    a2d = flat_act.reshape(rows, LANES)

    # Block rows: multiple of 8, capped at MAX_BLOCK_ROWS, shrunk for tiny inputs.
    block_rows = min(MAX_BLOCK_ROWS, ((rows + 7) // 8) * 8)
    grid = (pl.cdiv(rows, block_rows),)

    # Static: does the grid over-cover the row extent (ragged last block)?
    needs_mask = (rows % block_rows) != 0

    meta = jnp.array([n_elems, rows], dtype=jnp.int32)

    out = pl.pallas_call(
        functools.partial(_rmsle_kernel, needs_mask=needs_mask),
        out_shape=jax.ShapeDtypeStruct((1, 1), jnp.float32),
        grid_spec=pltpu.PrefetchScalarGridSpec(
            num_scalar_prefetch=1,
            grid=grid,
            in_specs=[
                pl.BlockSpec((block_rows, LANES), lambda i, m: (i, 0)),
                pl.BlockSpec((block_rows, LANES), lambda i, m: (i, 0)),
            ],
            out_specs=pl.BlockSpec((1, 1), lambda i, m: (0, 0)),
            scratch_shapes=[pltpu.VMEM((8, LANES), jnp.float32)],
        ),
        compiler_params=pltpu.CompilerParams(
            dimension_semantics=("arbitrary",),
        ),
    )(meta, p2d, a2d)
    return out[0, 0]


if __name__ == "__main__":
    key = jax.random.PRNGKey(0)
    k1, k2 = jax.random.split(key)
    # small shapes consistent with a typical NCHW regression target
    shape = (2, 4, 16, 16)
    # RMSLE requires pred + 1 > 0 and actual + 1 > 0; use non-negative inputs
    pred = jax.random.uniform(k1, shape, dtype=jnp.float32) * 5.0
    actual = jax.random.uniform(k2, shape, dtype=jnp.float32) * 5.0

    loss = rmsle_loss(pred, actual)
    jax.block_until_ready(loss)

    # reference check in plain JAX
    ref = jnp.sqrt(jnp.mean((jnp.log(pred + 1) - jnp.log(actual + 1)) ** 2))
    assert jnp.allclose(loss, ref, rtol=1e-5, atol=1e-6), (loss, ref)

    # also exercise a shape whose flat size is NOT a multiple of the block
    # (ragged last block path with in-kernel masking)
    shape2 = (3, 5, 7, 11)
    pred2 = jax.random.uniform(k1, shape2, dtype=jnp.float32) * 5.0
    actual2 = jax.random.uniform(k2, shape2, dtype=jnp.float32) * 5.0
    loss2 = rmsle_loss(pred2, actual2)
    jax.block_until_ready(loss2)
    ref2 = jnp.sqrt(jnp.mean((jnp.log(pred2 + 1) - jnp.log(actual2 + 1)) ** 2))
    assert jnp.allclose(loss2, ref2, rtol=1e-5, atol=1e-6), (loss2, ref2)

    print("KERNEL_OK")
</pallas_src>

<mosaic_0001>
module attributes {stable_mosaic.version = 11 : i64} {
  func.func @_rmsle_kernel(%arg0: i32, %arg1: memref<2xi32, #tpu.memory_space<smem>>, %arg2: memref<16x128xf32, #tpu.memory_space<vmem>>, %arg3: memref<16x128xf32, #tpu.memory_space<vmem>>, %arg4: memref<1x1xf32, #tpu.memory_space<vmem>>, %arg5: memref<8x128xf32, #tpu.memory_space<vmem>>) attributes {dimension_semantics = [#tpu.dimension_semantics<arbitrary>], iteration_bounds = array<i64: 1>, scalar_prefetch = 1 : i64, scratch_operands = 1 : i64, tpu.core_type = #tpu.core_type<tc>, window_params = [{transform_indices = @transform_0, window_bounds = array<i64: 16, 128>}, {transform_indices = @transform_1, window_bounds = array<i64: 16, 128>}, {pipeline_mode = #tpu.pipeline_mode<synchronous>, transform_indices = @transform_2, window_bounds = array<i64: 1, 1>}]} {
    %c0_i32 = arith.constant 0 : i32
    %0 = arith.cmpi eq, %arg0, %c0_i32 : i32
    %1 = arith.extui %0 : i1 to i32
    %c0_i32_0 = arith.constant 0 : i32
    %2 = arith.cmpi ne, %1, %c0_i32_0 : i32
    scf.if %2 {
      %cst_10 = arith.constant 0.000000e+00 : f32
      %17 = vector.broadcast %cst_10 : f32 to vector<8x128xf32>
      %c0_11 = arith.constant 0 : index
      %c0_12 = arith.constant 0 : index
      %18 = vector.load %arg5[%c0_11, %c0_12] : memref<8x128xf32, #tpu.memory_space<vmem>>, vector<8x128xf32>
      tpu.vector_store %arg5[%c0_11, %c0_12], %17 {strides = array<i32>} : memref<8x128xf32, #tpu.memory_space<vmem>>, vector<8x128xf32>,
    } else {
    }
    %c0 = arith.constant 0 : index
    %c0_1 = arith.constant 0 : index
    %3 = vector.load %arg2[%c0, %c0_1] : memref<16x128xf32, #tpu.memory_space<vmem>>, vector<16x128xf32>
    %c0_2 = arith.constant 0 : index
    %c0_3 = arith.constant 0 : index
    %4 = vector.load %arg3[%c0_2, %c0_3] : memref<16x128xf32, #tpu.memory_space<vmem>>, vector<16x128xf32>
    %5 = math.log1p %3 : vector<16x128xf32>
    %6 = math.log1p %4 : vector<16x128xf32>
    %7 = arith.subf %5, %6 : vector<16x128xf32>
    %8 = arith.mulf %7, %7 : vector<16x128xf32>
    %c0_4 = arith.constant 0 : index
    %c0_5 = arith.constant 0 : index
    %9 = vector.load %arg5[%c0_4, %c0_5] : memref<8x128xf32, #tpu.memory_space<vmem>>, vector<8x128xf32>
    %10 = vector.shape_cast %8 : vector<16x128xf32> to vector<2x8x128xf32>
    %cst = arith.constant dense<0.000000e+00> : vector<8x128xf32>
    %11 = vector.multi_reduction <add>, %10, %cst [0] : vector<2x8x128xf32> to vector<8x128xf32>
    %12 = arith.addf %9, %11 : vector<8x128xf32>
    %c0_6 = arith.constant 0 : index
    %c0_7 = arith.constant 0 : index
    %13 = vector.load %arg5[%c0_6, %c0_7] : memref<8x128xf32, #tpu.memory_space<vmem>>, vector<8x128xf32>
    tpu.vector_store %arg5[%c0_6, %c0_7], %12 {strides = array<i32>} : memref<8x128xf32, #tpu.memory_space<vmem>>, vector<8x128xf32>,
    %c0_i32_8 = arith.constant 0 : i32
    %14 = arith.cmpi eq, %arg0, %c0_i32_8 : i32
    %15 = arith.extui %14 : i1 to i32
    %c0_i32_9 = arith.constant 0 : i32
    %16 = arith.cmpi ne, %15, %c0_i32_9 : i32
    scf.if %16 {
      %c0_10 = arith.constant 0 : index
      %17 = memref.load %arg1[%c0_10] : memref<2xi32, #tpu.memory_space<smem>>
      %18 = arith.sitofp %17 : i32 to f32
      %c0_11 = arith.constant 0 : index
      %c0_12 = arith.constant 0 : index
      %19 = vector.load %arg5[%c0_11, %c0_12] : memref<8x128xf32, #tpu.memory_space<vmem>>, vector<8x128xf32>
      %20 = vector.shape_cast %19 : vector<8x128xf32> to vector<1x8x128xf32>
      %cst_13 = arith.constant dense<0.000000e+00> : vector<1xf32>
      %21 = vector.multi_reduction <add>, %20, %cst_13 [1, 2] : vector<1x8x128xf32> to vector<1xf32>
      %22 = vector.shape_cast %21 : vector<1xf32> to vector<1x1x1xf32>
      %23 = vector.extract %22[0, 0, 0] : f32 from vector<1x1x1xf32>
      %24 = arith.divf %23, %18 : f32
      %25 = math.sqrt %24 : f32
      %26 = vector.broadcast %25 : f32 to vector<1x1xf32>
      %c0_14 = arith.constant 0 : index
      %c0_15 = arith.constant 0 : index
      %27 = vector.load %arg4[%c0_14, %c0_15] : memref<1x1xf32, #tpu.memory_space<vmem>>, vector<1x1xf32>
      tpu.vector_store %arg4[%c0_14, %c0_15], %26 {strides = array<i32>} : memref<1x1xf32, #tpu.memory_space<vmem>>, vector<1x1xf32>,
    } else {
    }
    return
  }
  func.func @transform_0(%arg0: i32, %arg1: memref<2xi32, #tpu.memory_space<smem>>) -> (i32, i32) {
    %c0_i32 = arith.constant 0 : i32
    %c0_i32_0 = arith.constant 0 : i32
    return %arg0, %c0_i32 : i32, i32
  }
  func.func @transform_1(%arg0: i32, %arg1: memref<2xi32, #tpu.memory_space<smem>>) -> (i32, i32) {
    %c0_i32 = arith.constant 0 : i32
    %c0_i32_0 = arith.constant 0 : i32
    return %arg0, %c0_i32 : i32, i32
  }
  func.func @transform_2(%arg0: i32, %arg1: memref<2xi32, #tpu.memory_space<smem>>) -> (i32, i32) {
    %c0_i32 = arith.constant 0 : i32
    %c0_i32_0 = arith.constant 0 : i32
    %c0_i32_1 = arith.constant 0 : i32
    return %c0_i32, %c0_i32_0 : i32, i32
  }
}

</mosaic_0001>

<llo_original>
// kernel: tpu_custom_call.1
$region0: #{tpu_custom_call.1}
  #allocation0 [shape = 'u32[]', space=smem, size = 0x4, offset = 0x4, fixed_abs, tag = 'smem constant byte address 0x4 - core index']
  #allocation1 [shape = 'u32[144,128]{1,0:T(1,128)}', space=vmem, size = 0x12000, scoped, tag = 'internal scratch']
  #allocation2 [shape = 'f32[8,128]{1,0:T(8,128)}', space=vmem, size = 0x1000, scoped, tag = 'scratch operand']
  #allocation3 [shape = 's32[1]{0}', space=sflag, size = 0x4, scoped, tag = 'scoped memory for tpu_custom_call.1']
  #allocation4 [shape = 'u8[512]{0}', space=smem, size = 0x200, scoped, tag = 'prefetched SMEM operand 0']
  %s0 = inlined_call_operand.hbm [shape: s32[2], index: 0, kind: input, shape index: {}]
  %s1 = inlined_call_operand.hbm [shape: f32[16,128], index: 1, kind: input, shape index: {}]
  %s2 = inlined_call_operand.hbm [shape: f32[16,128], index: 2, kind: input, shape index: {}]
  %s3 = inlined_call_operand.hbm [shape: f32[1,1], index: 3, kind: output, shape index: {}]
  %s4 = sld [smem:[#allocation0]]
  $region34: #{tpu_custom_call.1} parent=0
    _
  %s6 = ssub.s32 1, %s4
  %s7 = scalar_select 0, %s6, %s4
  %9 = dma.hbm_to_smem %s0, 16, [#allocation4], [#allocation3]
  %10 = dma.done [#allocation3], 16
  %11 = sfence
  $region1: #{tpu_custom_call.1} parent=0
    #allocation5 [shape = 'u8[8192]{0}', space=vmem, size = 0x2000, scoped, tag = 'input window, operand 1, single buffered']
    #allocation6 [shape = 's32[1]{0}', space=sflag, size = 0x4, scoped, tag = 'scoped memory for tpu_custom_call.1']
    #allocation7 [shape = 's32[1]{0}', space=sflag, size = 0x4, scoped, tag = 'scoped memory for tpu_custom_call.1']
    #allocation8 [shape = 'u8[8192]{0}', space=vmem, size = 0x2000, scoped, tag = 'input window, operand 2, single buffered']
    #allocation9 [shape = 's32[1]{0}', space=sflag, size = 0x4, scoped, tag = 'scoped memory for tpu_custom_call.1']
    #allocation10 [shape = 'u8[512]{0}', space=vmem, size = 0x400, scoped, tag = 'output window, operand 0, single buffered']
    %12 = vsyncpa [#allocation6], 0
    %13 = vsyncpa [#allocation9], 0
    %14 = vsyncpa [#allocation7], 0
    // Predicated region
    $region2: #{tpu_custom_call.1} parent=1 // pred_check
      _
    $region3: #{tpu_custom_call.1} parent=1 // pred_check_branch
      %16 = sbr.rel (0) target = $region5
    $region4: #{tpu_custom_call.1} parent=1 // pred_region
      %s18 = ssub.s32 256, 256
      %19 = vsyncadd [#allocation6], %s18
      %s20 = sshll.u32 [#allocation5], 4
      %s21 = int_to_ptr.vmem [resolvable:$true] %s20
      %26 = dma.hbm_to_vmem [thread:$0]  %s1, 256, %s21, [#allocation6], 128, 128, 8
    $region5: #{tpu_custom_call.1} parent=1 // pred_fallthru
      _
    // Predicated region
    $region6: #{tpu_custom_call.1} parent=1 // pred_check
      _
    $region7: #{tpu_custom_call.1} parent=1 // pred_check_branch
      %28 = sbr.rel (0) target = $region9
    $region8: #{tpu_custom_call.1} parent=1 // pred_region
      %s30 = ssub.s32 256, 256
      %31 = vsyncadd [#allocation9], %s30
      %s32 = sshll.u32 [#allocation8], 4
      %s33 = int_to_ptr.vmem [resolvable:$true] %s32
      %38 = dma.hbm_to_vmem [thread:$0]  %s2, 256, %s33, [#allocation9], 128, 128, 8
    $region9: #{tpu_custom_call.1} parent=1 // pred_fallthru
      _
    // Predicated region
    $region10: #{tpu_custom_call.1} parent=1 // pred_check
      _
    $region11: #{tpu_custom_call.1} parent=1 // pred_check_branch
      %40 = sbr.rel (0) target = $region13
    $region12: #{tpu_custom_call.1} parent=1 // pred_region
      %41 = dma.done [#allocation6], 256
    $region13: #{tpu_custom_call.1} parent=1 // pred_fallthru
      _
    // Predicated region
    $region14: #{tpu_custom_call.1} parent=1 // pred_check
      _
    $region15: #{tpu_custom_call.1} parent=1 // pred_check_branch
      %43 = sbr.rel (0) target = $region17
    $region16: #{tpu_custom_call.1} parent=1 // pred_region
      %44 = dma.done [#allocation9], 256
    $region17: #{tpu_custom_call.1} parent=1 // pred_fallthru
      _
    %p45 = scmp.eq.s32.totalorder 0, 0
    // Predicated region
    $region18: #{tpu_custom_call.1} parent=1 // pred_check
      %p46 = pneg %p45
    $region19: #{tpu_custom_call.1} parent=1 // pred_check_branch
      %48 = sbr.rel (%p46) target = $region21
    $region20: #{tpu_custom_call.1} parent=1 // pred_region
      %49 = vst [vmem:[#allocation2] sm:$0xff] 0.0
    $region21: #{tpu_custom_call.1} parent=1 // pred_fallthru
      _
    %v50 = vld [vmem:[#allocation5] sm:$0xff]
    %v51 = vld [vmem:[#allocation5 + $0x8] sm:$0xff]
    %v52 = vld [vmem:[#allocation8] sm:$0xff]
    %v53 = vld [vmem:[#allocation8 + $0x8] sm:$0xff]
    %v54 = vadd.f32 %v50, 1.0
    %v55 = vlog2.pop %v54
    %v56 = vmul.f32 %v55, 0.6931472
    %v57 = vmul.f32 -0.5, %v50
    %v58 = vadd.f32 %v57, 1.0
    %v59 = vmul.f32 %v58, %v50
    %v60 = vand.u32 2147483647, %v50
    %vm61 = vcmp.lt.f32.partialorder %v60, 0.0004427343
    %v62 = vsel %vm61, %v59, %v56
    %v63 = vadd.f32 %v51, 1.0
    %v64 = vlog2.pop %v63
    %v65 = vmul.f32 %v64, 0.6931472
    %v66 = vmul.f32 -0.5, %v51
    %v67 = vadd.f32 %v66, 1.0
    %v68 = vmul.f32 %v67, %v51
    %v69 = vand.u32 2147483647, %v51
    %vm70 = vcmp.lt.f32.partialorder %v69, 0.0004427343
    %v71 = vsel %vm70, %v68, %v65
    %v72 = vadd.f32 %v52, 1.0
    %v73 = vlog2.pop %v72
    %v74 = vmul.f32 %v73, 0.6931472
    %v75 = vmul.f32 -0.5, %v52
    %v76 = vadd.f32 %v75, 1.0
    %v77 = vmul.f32 %v76, %v52
    %v78 = vand.u32 2147483647, %v52
    %vm79 = vcmp.lt.f32.partialorder %v78, 0.0004427343
    %v80 = vsel %vm79, %v77, %v74
    %v81 = vadd.f32 %v53, 1.0
    %v82 = vlog2.pop %v81
    %v83 = vmul.f32 %v82, 0.6931472
    %v84 = vmul.f32 -0.5, %v53
    %v85 = vadd.f32 %v84, 1.0
    %v86 = vmul.f32 %v85, %v53
    %v87 = vand.u32 2147483647, %v53
    %vm88 = vcmp.lt.f32.partialorder %v87, 0.0004427343
    %v89 = vsel %vm88, %v86, %v83
    %v90 = vsub.f32 %v62, %v80
    %v91 = vsub.f32 %v71, %v89
    %v92 = vmul.f32 %v90, %v90
    %v93 = vmul.f32 %v91, %v91
    %v94 = vld [vmem:[#allocation2] sm:$0xff]
    %v95 = vadd.f32 %v92, %v93
    %v96 = vadd.f32 %v94, %v95
    %97 = vst [vmem:[#allocation2] sm:$0xff] %v96
    // Predicated region
    $region22: #{tpu_custom_call.1} parent=1 // pred_check
      %p98 = pneg %p45
    $region23: #{tpu_custom_call.1} parent=1 // pred_check_branch
      %100 = sbr.rel (%p98) target = $region25
    $region24: #{tpu_custom_call.1} parent=1 // pred_region
      %s101 = sld [smem:[#allocation4]]
      %s102 = scvt.s32.f32 %s101
      %v103 = vld [vmem:[#allocation2] sm:$0xff]
      %104 = vadd.xlane.f32.xlu0 %v103
      %v105 = vpop.xlane.xlu0 %104
      %v106 = vrot.slane %v105, 4
      %v107 = vadd.f32 %v105, %v106
      %v108 = vrot.slane %v107, 2
      %v109 = vadd.f32 %v107, %v108
      %v110 = vrot.slane %v109, 1
      %v111 = vadd.f32 %v109, %v110
      %s112 = vtos %v111
      %v113 = vstv %s102
      %v114 = vrcp.pop %v113
      %s115 = vtos %v114
      %s116 = smul.f32 %s112, %s115
      %v117 = vstv %s116
      %v118 = vrsqrt.pop %v117
      %v119 = vmul.f32 %v117, %v118
      %vm120 = vcmp.eq.f32.partialorder %v117, inf
      %v121 = vsel %vm120, %v117, %v119
      %vm122 = vcmp.eq.f32.partialorder %v117, 0.0
      %v123 = vand.u32 %v117, 2147483648
      %v124 = vsel %vm122, %v123, %v121
      %s125 = vtos %v124
      %v126 = vstv %s125
      %vm127 = vcmask 0
      %128 = vst.msk [vmem:[#allocation10] sm:$0x1] %vm127, %v126
    $region25: #{tpu_custom_call.1} parent=1 // pred_fallthru
      _
    // Predicated region
    $region26: #{tpu_custom_call.1} parent=1 // pred_check
      _
    $region27: #{tpu_custom_call.1} parent=1 // pred_check_branch
      %130 = sbr.rel (0) target = $region29
    $region28: #{tpu_custom_call.1} parent=1 // pred_region
      %s132 = ssub.s32 16, 16
      %133 = vsyncadd [#allocation7], %s132
      %s135 = sshll.u32 [#allocation10], 4
      %s136 = int_to_ptr.vmem [resolvable:$true] %s135
      %138 = dma.vmem_to_hbm [thread:$0]  %s136, 16, %s3, [#allocation7]
    $region29: #{tpu_custom_call.1} parent=1 // pred_fallthru
      _
    // Predicated region
    $region30: #{tpu_custom_call.1} parent=1 // pred_check
      _
    $region31: #{tpu_custom_call.1} parent=1 // pred_check_branch
      %140 = sbr.rel (0) target = $region33
    $region32: #{tpu_custom_call.1} parent=1 // pred_region
      %141 = dma.done [#allocation7], 16
    $region33: #{tpu_custom_call.1} parent=1 // pred_fallthru
      _
    %142 = vsyncpa [#allocation6], 1
    %143 = vsyncpa [#allocation9], 1
    %144 = vsyncpa [#allocation7], 1

</llo_original>
